<compile_context>
chip_gen: v6e
topology: v6e:2x2x1
jax: 0.10.0
libtpu: 0.0.40
codegen_flags: <defaults>
</compile_context>

<pallas_src>
import math

import jax
import jax.numpy as jnp
from jax import lax
from jax.experimental import pallas as pl
from jax.experimental.pallas import tpu as pltpu

NEG_INF = -1e9
_MIB = 1024 * 1024


# ---------------------------------------------------------------------------
# Tiling / padding helpers
# ---------------------------------------------------------------------------
def _round_up(x, m):
    return (x + m - 1) // m * m


def _tile(n, target, mult=8):
    """Pad n to a multiple of `mult`, then pick a tile (<= target) that divides it."""
    n_pad = _round_up(n, mult)
    t = min(target, n_pad)
    n_pad = _round_up(n_pad, t)
    return n_pad, t


def _pad_rows(x, n_pad, value=0):
    n = x.shape[0]
    if n_pad == n:
        return x
    pad = [(0, n_pad - n)] + [(0, 0)] * (x.ndim - 1)
    return jnp.pad(x, pad, constant_values=value)


def _mosaic(sem, block_bytes, scratch_bytes=0):
    """CompilerParams with an explicit scoped-VMEM limit sized from per-step buffers."""
    est = int(2 * sum(block_bytes) * 1.25) + int(scratch_bytes)   # dbl-buffer + 25%
    limit = min(max(est, 32 * _MIB), 100 * _MIB)                  # never below defaults
    return pltpu.CompilerParams(dimension_semantics=sem, vmem_limit_bytes=limit)


# ---------------------------------------------------------------------------
# Kernel 0: projection  (M, D) @ (D, Dout) -> bf16   (hoists Q/K/V out of attention)
# ---------------------------------------------------------------------------
def _project_kernel(x_ref, w_ref, o_ref):
    o_ref[...] = jnp.dot(x_ref[...], w_ref[...],
                         preferred_element_type=jnp.float32).astype(o_ref.dtype)


def project(x_bf16, w_bf16, tm):
    m, d = x_bf16.shape
    dout = w_bf16.shape[1]
    return pl.pallas_call(
        _project_kernel,
        out_shape=jax.ShapeDtypeStruct((m, dout), jnp.bfloat16),
        grid=(m // tm,),
        in_specs=[pl.BlockSpec((tm, d), lambda i: (i, 0)),
                  pl.BlockSpec((d, dout), lambda i: (0, 0))],
        out_specs=pl.BlockSpec((tm, dout), lambda i: (i, 0)),
        compiler_params=_mosaic(("parallel",),
                                [tm * d * 2, d * dout * 2, tm * dout * 2]),
    )(x_bf16, w_bf16)


# ---------------------------------------------------------------------------
# Kernel 1: Injector — flash-style masked cross-attention, Q/K/V precomputed.
#   out = x + softmax(Q K^T + batch_mask) V Wo      (scale folded into Wq)
# ---------------------------------------------------------------------------
def _inject_flash_kernel(x_ref, q_ref, rb_ref, k_ref, v_ref, tb_ref, wo_ref,
                         o_ref, m_sc, l_sc, acc_sc):
    kv = pl.program_id(1)

    @pl.when(kv == 0)
    def _():
        m_sc[...] = jnp.full_like(m_sc, -jnp.inf)
        l_sc[...] = jnp.zeros_like(l_sc)
        acc_sc[...] = jnp.zeros_like(acc_sc)

    s = lax.dot_general(q_ref[...], k_ref[...], (((1,), (1,)), ((), ())),
                        preferred_element_type=jnp.float32)      # (tm, tkv) f32

    rb = rb_ref[...]                                             # (tm, 1) int32
    tb = tb_ref[...]                                             # (1, tkv) int32
    visible = (rb == tb) | ((rb == -1) & (tb >= 0))              # rb==-1: sees all real
    s = jnp.where(visible, s, NEG_INF)

    m_prev = m_sc[...]
    m_new = jnp.maximum(m_prev, jnp.max(s, axis=-1, keepdims=True))
    alpha = jnp.exp(m_prev - m_new)
    p = jnp.exp(s - m_new)
    l_sc[...] = alpha * l_sc[...] + jnp.sum(p, axis=-1, keepdims=True)
    acc_sc[...] = alpha * acc_sc[...] + jnp.dot(
        p.astype(jnp.bfloat16), v_ref[...], preferred_element_type=jnp.float32)
    m_sc[...] = m_new

    @pl.when(kv == pl.num_programs(1) - 1)
    def _():
        ctx = acc_sc[...] * pl.reciprocal(l_sc[...], approx=True)
        o_ref[...] = x_ref[...] + jnp.dot(ctx.astype(jnp.bfloat16), wo_ref[...],
                                          preferred_element_type=jnp.float32)


def attn_inject(x, kv, row_batch, tok_batch, p, tm_target=256, tkv_target=512):
    m0, d = x.shape
    t0 = kv.shape[0]
    m_pad, tm = _tile(m0, tm_target)
    t_pad, tkv = _tile(t0, tkv_target)

    scale = 1.0 / math.sqrt(d)
    wq = (p["wq"] * scale).astype(jnp.bfloat16)
    wkv = jnp.concatenate([p["wk"], p["wv"]], axis=1).astype(jnp.bfloat16)
    wo = p["wo"].astype(jnp.bfloat16)

    x_p = _pad_rows(x, m_pad)
    kv_p = _pad_rows(kv, t_pad).astype(jnp.bfloat16)
    rb = _pad_rows(row_batch.astype(jnp.int32), m_pad, value=-2).reshape(m_pad, 1)
    tb = _pad_rows(tok_batch.astype(jnp.int32), t_pad, value=-2).reshape(1, t_pad)

    # Grid-invariant projections hoisted out of the attention grid.
    q = project(x_p.astype(jnp.bfloat16), wq, tm)        # (m_pad, d)  bf16
    kvp = project(kv_p, wkv, tkv)                        # (t_pad, 2d) bf16
    k, v = kvp[:, :d], kvp[:, d:]

    blk = [tm * d * 4, tm * d * 2, tm * 4, tkv * d * 2, tkv * d * 2,
           tkv * 4, d * d * 2, tm * d * 4]
    out = pl.pallas_call(
        _inject_flash_kernel,
        out_shape=jax.ShapeDtypeStruct((m_pad, d), jnp.float32),
        grid=(m_pad // tm, t_pad // tkv),
        in_specs=[
            pl.BlockSpec((tm, d), lambda i, j: (i, 0)),     # x rows (f32 residual)
            pl.BlockSpec((tm, d), lambda i, j: (i, 0)),     # Q rows (bf16)
            pl.BlockSpec((tm, 1), lambda i, j: (i, 0)),     # row batch ids
            pl.BlockSpec((tkv, d), lambda i, j: (j, 0)),    # K tile (bf16)
            pl.BlockSpec((tkv, d), lambda i, j: (j, 0)),    # V tile (bf16)
            pl.BlockSpec((1, tkv), lambda i, j: (0, j)),    # token batch ids
            pl.BlockSpec((d, d), lambda i, j: (0, 0)),      # Wo
        ],
        out_specs=pl.BlockSpec((tm, d), lambda i, j: (i, 0)),
        scratch_shapes=[pltpu.VMEM((tm, 1), jnp.float32),
                        pltpu.VMEM((tm, 1), jnp.float32),
                        pltpu.VMEM((tm, d), jnp.float32)],
        compiler_params=_mosaic(("parallel", "arbitrary"), blk,
                                scratch_bytes=tm * (d + 2) * 4),
    )(x_p, q, rb, k, v, tb, wo)
    return out[:m0]


# ---------------------------------------------------------------------------
# Kernel 2a: GraphEncoder entity branch — flash-tiled adjacency-masked attention.
#   agg = softmax(Q K^T masked-by-adj) V + rel_msg ;  out = E + relu(agg Wo)
# ---------------------------------------------------------------------------
def _graph_ent_flash_kernel(e_ref, q_ref, k_ref, v_ref, adj_ref, rmsg_ref, wo_ref,
                            o_ref, m_sc, l_sc, acc_sc):
    kv = pl.program_id(1)

    @pl.when(kv == 0)
    def _():
        m_sc[...] = jnp.full_like(m_sc, -jnp.inf)
        l_sc[...] = jnp.zeros_like(l_sc)
        acc_sc[...] = jnp.zeros_like(acc_sc)

    s = lax.dot_general(q_ref[...], k_ref[...], (((1,), (1,)), ((), ())),
                        preferred_element_type=jnp.float32)      # (t, t) f32
    s = jnp.where(adj_ref[...] > 0, s, NEG_INF)                  # int8 compare, no f32 cast

    m_prev = m_sc[...]
    m_new = jnp.maximum(m_prev, jnp.max(s, axis=-1, keepdims=True))
    alpha = jnp.exp(m_prev - m_new)
    p = jnp.exp(s - m_new)
    l_sc[...] = alpha * l_sc[...] + jnp.sum(p, axis=-1, keepdims=True)
    acc_sc[...] = alpha * acc_sc[...] + jnp.dot(
        p.astype(jnp.bfloat16), v_ref[...], preferred_element_type=jnp.float32)
    m_sc[...] = m_new

    @pl.when(kv == pl.num_programs(1) - 1)
    def _():
        agg = acc_sc[...] * pl.reciprocal(l_sc[...], approx=True) + rmsg_ref[...]
        o_ref[...] = e_ref[...] + jnp.maximum(
            jnp.dot(agg.astype(jnp.bfloat16), wo_ref[...],
                    preferred_element_type=jnp.float32), 0.0)


def graph_encoder_entities(ent, adj_i8, rmsg, p, t_target=256):
    n0, d = ent.shape
    n_pad, t = _tile(n0, t_target)

    scale = 1.0 / math.sqrt(d)
    w_qkv = jnp.concatenate([p["wq"] * scale, p["wk"], p["wv"]],
                            axis=1).astype(jnp.bfloat16)
    wo = p["wo"].astype(jnp.bfloat16)

    ent_p = _pad_rows(ent, n_pad)
    rmsg_p = _pad_rows(rmsg, n_pad)
    adj_p = jnp.pad(adj_i8, ((0, n_pad - n0), (0, n_pad - n0)))

    # QKV hoisted: computed once for all entities, not once per row tile.
    qkv = project(ent_p.astype(jnp.bfloat16), w_qkv, t)          # (n_pad, 3d) bf16
    q, k, v = qkv[:, :d], qkv[:, d:2 * d], qkv[:, 2 * d:]

    blk = [t * d * 4, t * d * 2, t * d * 2, t * d * 2, t * t,
           t * d * 4, d * d * 2, t * d * 4]
    out = pl.pallas_call(
        _graph_ent_flash_kernel,
        out_shape=jax.ShapeDtypeStruct((n_pad, d), jnp.float32),
        grid=(n_pad // t, n_pad // t),
        in_specs=[
            pl.BlockSpec((t, d), lambda i, j: (i, 0)),     # entities (f32 residual)
            pl.BlockSpec((t, d), lambda i, j: (i, 0)),     # Q
            pl.BlockSpec((t, d), lambda i, j: (j, 0)),     # K tile
            pl.BlockSpec((t, d), lambda i, j: (j, 0)),     # V tile
            pl.BlockSpec((t, t), lambda i, j: (i, j)),     # int8 adjacency tile
            pl.BlockSpec((t, d), lambda i, j: (i, 0)),     # relation messages
            pl.BlockSpec((d, d), lambda i, j: (0, 0)),     # Wo
        ],
        out_specs=pl.BlockSpec((t, d), lambda i, j: (i, 0)),
        scratch_shapes=[pltpu.VMEM((t, 1), jnp.float32),
                        pltpu.VMEM((t, 1), jnp.float32),
                        pltpu.VMEM((t, d), jnp.float32)],
        compiler_params=_mosaic(("parallel", "arbitrary"), blk,
                                scratch_bytes=t * (d + 2) * 4),
    )(ent_p, q, k, v, adj_p, rmsg_p, wo)
    return out[:n0]


# ---------------------------------------------------------------------------
# Kernel 2b: GraphEncoder relation branch   out_r = R + relu(R Wr)
# ---------------------------------------------------------------------------
def _relation_ffn_kernel(rel_ref, wr_ref, o_ref):
    rel = rel_ref[...]
    o_ref[...] = rel + jnp.maximum(
        jnp.dot(rel.astype(jnp.bfloat16), wr_ref[...],
                preferred_element_type=jnp.float32), 0.0)


def relation_ffn(rel, p, tr_target=256):
    r0, d = rel.shape
    r_pad, tr = _tile(r0, tr_target)
    rel_p = _pad_rows(rel, r_pad)
    wr = p["wr"].astype(jnp.bfloat16)
    out = pl.pallas_call(
        _relation_ffn_kernel,
        out_shape=jax.ShapeDtypeStruct((r_pad, d), jnp.float32),
        grid=(r_pad // tr,),
        in_specs=[pl.BlockSpec((tr, d), lambda i: (i, 0)),
                  pl.BlockSpec((d, d), lambda i: (0, 0))],
        out_specs=pl.BlockSpec((tr, d), lambda i: (i, 0)),
        compiler_params=_mosaic(("parallel",), [tr * d * 4, d * d * 2, tr * d * 4]),
    )(rel_p, wr)
    return out[:r0]


# ---------------------------------------------------------------------------
# Kernel 3: ReshapeRelation linear  (R, D) @ (D, D*D) + b -> (R, D*D)   bf16 output
# column-tiled weight streaming (lane-dense 128-multiple output slabs)
# ---------------------------------------------------------------------------
def _relation_reshape_kernel(rel_ref, w_ref, b_ref, o_ref):
    o_ref[...] = (jnp.dot(rel_ref[...], w_ref[...],
                          preferred_element_type=jnp.float32)
                  + b_ref[...]).astype(o_ref.dtype)


def relation_reshape(rel_emb, p, tn_target=2048):
    r, d = rel_emb.shape
    dd = d * d
    dd_pad, tn = _tile(dd, tn_target, mult=128)

    rel_b = rel_emb.astype(jnp.bfloat16)
    w = p["w"].astype(jnp.bfloat16)
    b = p["b"]
    if dd_pad != dd:
        w = jnp.pad(w, ((0, 0), (0, dd_pad - dd)))
        b = jnp.pad(b, ((0, 0), (0, dd_pad - dd)))

    flat = pl.pallas_call(
        _relation_reshape_kernel,
        out_shape=jax.ShapeDtypeStruct((r, dd_pad), jnp.bfloat16),
        grid=(dd_pad // tn,),
        in_specs=[
            pl.BlockSpec((r, d), lambda j: (0, 0)),     # relation embs (resident)
            pl.BlockSpec((d, tn), lambda j: (0, j)),    # weight columns (streamed)
            pl.BlockSpec((1, tn), lambda j: (0, j)),    # bias columns
        ],
        out_specs=pl.BlockSpec((r, tn), lambda j: (0, j)),
        compiler_params=_mosaic(("parallel",),
                                [r * d * 2, d * tn * 2, tn * 4, r * tn * 2]),
    )(rel_b, w, b)
    if dd_pad != dd:
        flat = flat[:, :dd]
    return flat.reshape(r, d, d)


# ---------------------------------------------------------------------------
# Kernel 4: RESCAL decoder  score[r] = E @ M_r @ E.T
# grid (r, i, j); tmp_i = E_i @ M_r cached in VMEM and reused across the innermost
# (arbitrary) j axis; j operand is pre-transposed E^T so no per-step XLU transpose.
# ---------------------------------------------------------------------------
def _rescal_kernel(ei_ref, m_ref, ejt_ref, o_ref, tmp_ref):
    @pl.when(pl.program_id(2) == 0)
    def _():
        tmp_ref[...] = jnp.dot(ei_ref[...], m_ref[0],
                               preferred_element_type=jnp.float32
                               ).astype(jnp.bfloat16)
    o_ref[0] = jnp.dot(tmp_ref[...], ejt_ref[...],
                       preferred_element_type=jnp.float32).astype(o_ref.dtype)


def rescal(ent_emb, rel_mats, t_target=512, out_dtype=jnp.float32):
    # out_dtype=jnp.bfloat16 halves the HBM-writeback cost (the decoder is
    # writeback-bound); f32 kept as default to match the reference output dtype.
    n0, d = ent_emb.shape
    r = rel_mats.shape[0]
    n_pad, t = _tile(n0, t_target)

    e_p = _pad_rows(ent_emb, n_pad).astype(jnp.bfloat16)   # (n_pad, d)
    e_t = e_p.T                                            # (d, n_pad) pre-transposed
    m_b = rel_mats.astype(jnp.bfloat16)                    # no-op if already bf16

    out_isz = jnp.dtype(out_dtype).itemsize
    blk = [t * d * 2, d * d * 2, d * t * 2, t * t * out_isz]
    score = pl.pallas_call(
        _rescal_kernel,
        out_shape=jax.ShapeDtypeStruct((r, n_pad, n_pad), out_dtype),
        grid=(r, n_pad // t, n_pad // t),
        in_specs=[
            pl.BlockSpec((t, d), lambda ri, ii, jj: (ii, 0)),        # E rows (i)
            pl.BlockSpec((1, d, d), lambda ri, ii, jj: (ri, 0, 0)),  # M_r (bf16)
            pl.BlockSpec((d, t), lambda ri, ii, jj: (0, jj)),        # E^T cols (j)
        ],
        out_specs=pl.BlockSpec((1, t, t), lambda ri, ii, jj: (ri, ii, jj)),
        scratch_shapes=[pltpu.VMEM((t, d), jnp.bfloat16)],
        compiler_params=_mosaic(("parallel", "parallel", "arbitrary"), blk,
                                scratch_bytes=t * d * 2),
    )(e_p, m_b, e_t)
    if n_pad != n0:
        score = score[:, :n0, :n0]
    return score


# ---------------------------------------------------------------------------
# Parameters (deterministic synthetic init — no checkpoint loading)
# ---------------------------------------------------------------------------
def init_params(key, dim, n_encoder_layers=1):
    def w(k, shape):
        return jax.random.normal(k, shape, jnp.float32) / math.sqrt(shape[0])

    keys = jax.random.split(key, 4 + 5 * n_encoder_layers + 1)
    inj = dict(wq=w(keys[0], (dim, dim)), wk=w(keys[1], (dim, dim)),
               wv=w(keys[2], (dim, dim)), wo=w(keys[3], (dim, dim)))
    enc_layers = []
    off = 4
    for l in range(n_encoder_layers):
        ks = keys[off + 5 * l: off + 5 * (l + 1)]
        enc_layers.append(dict(wq=w(ks[0], (dim, dim)), wk=w(ks[1], (dim, dim)),
                               wv=w(ks[2], (dim, dim)), wo=w(ks[3], (dim, dim)),
                               wr=w(ks[4], (dim, dim))))
    rel = dict(w=w(keys[-1], (dim, dim * dim)),
               b=jnp.zeros((1, dim * dim), jnp.float32))
    return dict(inj=inj, enc_layers=enc_layers, rel=rel)


# ---------------------------------------------------------------------------
# Forward glue (mirrors SubgraphGenerator.forward / GraphEncoderDecoder.forward)
# ---------------------------------------------------------------------------
def subgraph_generator_forward(params, queries, entities, relations, x_coo, batch):
    # queries:  [B, Lq, D]  float32
    # entities: [N, D]      float32
    # relations:[R, D]      float32
    # x_coo:    [E, 3]      int32   (head, relation, tail)
    # batch:    [N]         int32   (entity -> batch assignment)
    b, lq, d = queries.shape
    n = entities.shape[0]
    r = relations.shape[0]

    edge_index = x_coo[:, jnp.array([0, 2])].T          # [2, E]
    relation_index = x_coo[:, 1]                        # [E]
    heads, tails = edge_index[0], edge_index[1]

    # ---- Injector (single fused call: entities + relations attend to query tokens) ----
    flat_q = queries.reshape(b * lq, d)
    tok_batch = jnp.repeat(jnp.arange(b, dtype=jnp.int32), lq)        # [B*Lq]

    rows = jnp.concatenate([entities, relations], axis=0)             # [N+R, D]
    row_batch = jnp.concatenate([batch.astype(jnp.int32),
                                 jnp.full((r,), -1, jnp.int32)])      # -1 => sees all
    injected = attn_inject(rows, flat_q, row_batch, tok_batch, params["inj"])
    inj_ent, inj_rel = injected[:n], injected[n:n + r]

    # ---- GraphEncoder: int8 dense adjacency (self loops) + relation messages ----
    adj = jnp.zeros((n, n), jnp.int8).at[heads, tails].set(1)
    adj = adj.at[jnp.arange(n), jnp.arange(n)].set(1)
    # TODO(synk): relation-message scatter-add over edges has no clean Pallas
    # equivalent; done wrapper-side with a segment add.
    rmsg = jnp.zeros((n, d), jnp.float32).at[heads].add(inj_rel[relation_index])

    ent_emb, rel_emb = inj_ent, inj_rel
    for layer_p in params["enc_layers"]:
        ent_emb = graph_encoder_entities(ent_emb, adj, rmsg, layer_p)
        rel_emb = relation_ffn(rel_emb, layer_p)

    # ---- ReshapeRelation (bf16 matrices) + RESCAL decoder ----
    rel_mats = relation_reshape(rel_emb, params["rel"])   # [R, D, D] bf16
    score = rescal(ent_emb, rel_mats)                      # [R, N, N] f32
    return score


if __name__ == "__main__":
    DIM, B, LQ, N_ENT, N_REL, N_EDGE = 32, 2, 8, 16, 4, 24

    key = jax.random.PRNGKey(0)
    kq, ke, kr, kh, kt, krel = jax.random.split(key, 6)

    queries = jax.random.normal(kq, (B, LQ, DIM), jnp.float32)
    entities = jax.random.normal(ke, (N_ENT, DIM), jnp.float32)
    relations = jax.random.normal(kr, (N_REL, DIM), jnp.float32)
    heads = jax.random.randint(kh, (N_EDGE,), 0, N_ENT, jnp.int32)
    tails = jax.random.randint(kt, (N_EDGE,), 0, N_ENT, jnp.int32)
    rel_ids = jax.random.randint(krel, (N_EDGE,), 0, N_REL, jnp.int32)
    x_coo = jnp.stack([heads, rel_ids, tails], axis=1)    # [E, 3]
    batch = (jnp.arange(N_ENT) % B).astype(jnp.int32)     # entity -> batch

    params = init_params(jax.random.PRNGKey(1), DIM, n_encoder_layers=1)

    score = subgraph_generator_forward(params, queries, entities, relations, x_coo, batch)
    score = jax.block_until_ready(score)
    assert score.shape == (N_REL, N_ENT, N_ENT)
    print("KERNEL_OK")
</pallas_src>

<mosaic_0001>
module attributes {stable_mosaic.version = 11 : i64} {
  func.func @_project_kernel(%arg0: i32, %arg1: memref<24x32xbf16, #tpu.memory_space<vmem>>, %arg2: memref<32x32xbf16, #tpu.memory_space<vmem>>, %arg3: memref<24x32xbf16, #tpu.memory_space<vmem>>) attributes {dimension_semantics = [#tpu.dimension_semantics<parallel>], iteration_bounds = array<i64: 1>, scalar_prefetch = 0 : i64, scratch_operands = 0 : i64, tpu.core_type = #tpu.core_type<tc>, window_params = [{transform_indices = @transform_0, window_bounds = array<i64: 24, 32>}, {pipeline_mode = #tpu.pipeline_mode<synchronous>, transform_indices = @transform_1, window_bounds = array<i64: 32, 32>}, {transform_indices = @transform_2, window_bounds = array<i64: 24, 32>}]} {
    %c0 = arith.constant 0 : index
    %c0_0 = arith.constant 0 : index
    %0 = vector.load %arg1[%c0, %c0_0] : memref<24x32xbf16, #tpu.memory_space<vmem>>, vector<24x32xbf16>
    %c0_1 = arith.constant 0 : index
    %c0_2 = arith.constant 0 : index
    %1 = vector.load %arg2[%c0_1, %c0_2] : memref<32x32xbf16, #tpu.memory_space<vmem>>, vector<32x32xbf16>
    %cst = arith.constant dense<0.000000e+00> : vector<24x32xf32>
    %2 = tpu.matmul %0, %1, %cst {dimension_numbers = #tpu.dot_dimension_numbers<[1], [0], [0], [1], [0, 0, 1, 1], [], []>} : vector<24x32xbf16>, vector<32x32xbf16>, vector<24x32xf32> -> vector<24x32xf32>
    %3 = arith.truncf %2 : vector<24x32xf32> to vector<24x32xbf16>
    %c0_3 = arith.constant 0 : index
    %c0_4 = arith.constant 0 : index
    %4 = vector.load %arg3[%c0_3, %c0_4] : memref<24x32xbf16, #tpu.memory_space<vmem>>, vector<24x32xbf16>
    tpu.vector_store %arg3[%c0_3, %c0_4], %3 {strides = array<i32>} : memref<24x32xbf16, #tpu.memory_space<vmem>>, vector<24x32xbf16>,
    return
  }
  func.func @transform_0(%arg0: i32) -> (i32, i32) {
    %c0_i32 = arith.constant 0 : i32
    %c0_i32_0 = arith.constant 0 : i32
    return %arg0, %c0_i32 : i32, i32
  }
  func.func @transform_1(%arg0: i32) -> (i32, i32) {
    %c0_i32 = arith.constant 0 : i32
    %c0_i32_0 = arith.constant 0 : i32
    %c0_i32_1 = arith.constant 0 : i32
    return %c0_i32, %c0_i32_0 : i32, i32
  }
  func.func @transform_2(%arg0: i32) -> (i32, i32) {
    %c0_i32 = arith.constant 0 : i32
    %c0_i32_0 = arith.constant 0 : i32
    return %arg0, %c0_i32 : i32, i32
  }
}

</mosaic_0001>

<llo_original>
// kernel: tpu_custom_call.1
$region0: #{tpu_custom_call.1}
  #allocation0 [shape = 'u32[]', space=smem, size = 0x4, offset = 0x4, fixed_abs, tag = 'smem constant byte address 0x4 - core index']
  #allocation1 [shape = 'u32[144,128]{1,0:T(1,128)}', space=vmem, size = 0x12000, scoped, tag = 'internal scratch']
  %s0 = inlined_call_operand.hbm [shape: bf16[24,32], index: 0, kind: input, shape index: {}]
  %s1 = inlined_call_operand.hbm [shape: bf16[32,32], index: 1, kind: input, shape index: {}]
  %s2 = inlined_call_operand.hbm [shape: bf16[24,32], index: 2, kind: output, shape index: {}]
  %s3 = sld [smem:[#allocation0]]
  $region26: #{tpu_custom_call.1} parent=0
    _
  %s5 = ssub.s32 1, %s3
  %s6 = scalar_select 0, %s5, %s3
  $region1: #{tpu_custom_call.1} parent=0
    #allocation2 [shape = 'u8[6144]{0}', space=vmem, size = 0x1800, scoped, tag = 'input window, operand 0, single buffered']
    #allocation3 [shape = 's32[1]{0}', space=sflag, size = 0x4, scoped, tag = 'scoped memory for tpu_custom_call.1']
    #allocation4 [shape = 's32[1]{0}', space=sflag, size = 0x4, scoped, tag = 'scoped memory for tpu_custom_call.1']
    #allocation5 [shape = 'u8[8192]{0}', space=vmem, size = 0x2000, scoped, tag = 'input window, operand 1, single buffered']
    #allocation6 [shape = 's32[1]{0}', space=sflag, size = 0x4, scoped, tag = 'scoped memory for tpu_custom_call.1']
    #allocation7 [shape = 'u8[6144]{0}', space=vmem, size = 0x1800, scoped, tag = 'output window, operand 0, single buffered']
    %7 = vsyncpa [#allocation3], 0
    %8 = vsyncpa [#allocation6], 0
    %9 = vsyncpa [#allocation4], 0
    // Predicated region
    $region2: #{tpu_custom_call.1} parent=1 // pred_check
      _
    $region3: #{tpu_custom_call.1} parent=1 // pred_check_branch
      %11 = sbr.rel (0) target = $region5
    $region4: #{tpu_custom_call.1} parent=1 // pred_region
      %s13 = ssub.s32 192, 192
      %14 = vsyncadd [#allocation3], %s13
      %s15 = sshll.u32 [#allocation2], 4
      %s16 = int_to_ptr.vmem [resolvable:$true] %s15
      %21 = dma.hbm_to_vmem [thread:$0]  %s0, 192, %s16, [#allocation3], 64, 64, 4
    $region5: #{tpu_custom_call.1} parent=1 // pred_fallthru
      _
    // Predicated region
    $region6: #{tpu_custom_call.1} parent=1 // pred_check
      _
    $region7: #{tpu_custom_call.1} parent=1 // pred_check_branch
      %23 = sbr.rel (0) target = $region9
    $region8: #{tpu_custom_call.1} parent=1 // pred_region
      %s25 = ssub.s32 256, 256
      %26 = vsyncadd [#allocation6], %s25
      %s27 = sshll.u32 [#allocation5], 4
      %s28 = int_to_ptr.vmem [resolvable:$true] %s27
      %33 = dma.hbm_to_vmem [thread:$0]  %s1, 256, %s28, [#allocation6], 64, 64, 4
    $region9: #{tpu_custom_call.1} parent=1 // pred_fallthru
      _
    // Predicated region
    $region10: #{tpu_custom_call.1} parent=1 // pred_check
      _
    $region11: #{tpu_custom_call.1} parent=1 // pred_check_branch
      %35 = sbr.rel (0) target = $region13
    $region12: #{tpu_custom_call.1} parent=1 // pred_region
      %36 = dma.done [#allocation3], 192
    $region13: #{tpu_custom_call.1} parent=1 // pred_fallthru
      _
    // Predicated region
    $region14: #{tpu_custom_call.1} parent=1 // pred_check
      _
    $region15: #{tpu_custom_call.1} parent=1 // pred_check_branch
      %38 = sbr.rel (0) target = $region17
    $region16: #{tpu_custom_call.1} parent=1 // pred_region
      %39 = dma.done [#allocation6], 256
    $region17: #{tpu_custom_call.1} parent=1 // pred_fallthru
      _
    %v41 = vld [vmem:[#allocation2] sm:$0xf]
    %v42 = vld [vmem:[#allocation2 + $0x4] sm:$0xf]
    %v43 = vld [vmem:[#allocation2 + $0x8] sm:$0xf]
    %v44 = vld [vmem:[#allocation5] sm:$0xf]
    %v45 = vld [vmem:[#allocation5 + $0x4] sm:$0xf]
    %v46 = vld [vmem:[#allocation5 + $0x8] sm:$0xf]
    %v47 = vld [vmem:[#allocation5 + $0xc] sm:$0xf]
    %v51 = vunpack.c.l.b16 %v41
    %v52 = vunpack.c.l.b16 %v42
    %v53 = vunpack.c.l.b16 %v43
    %v54 = vpack.c.b16 %v52, %v51
    %v55 = vpack.c.b16 %v53, %v53
    %v60 = vunpack.c.l.b16 %v44
    %v61 = vunpack.c.l.b16 %v45
    %v62 = vunpack.c.l.b16 %v46
    %v63 = vunpack.c.l.b16 %v47
    %v64 = vpack.c.b16 %v61, %v60
    %v65 = vpack.c.b16 %v63, %v62
    %vm68 = vcmask 261120
    %v70 = vsel %vm68, %v54, 0
    %v73 = vsel %vm68, %v55, 0
    %75 = vmatprep.subr.bf16.mxu0 0
    %76 = vmatpush1.bf16.msra.mxu0 0
    %77 = vmatprep.subr.bf16.mxu0 0
    %78 = vmatpush1.bf16.msra.mxu0 0
    %79 = vmatprep.subr.bf16.mxu0 0
    %80 = vmatpush1.bf16.msra.mxu0 0
    %81 = vmatprep.subr.bf16.mxu0 0
    %82 = vmatpush1.bf16.msra.mxu0 0
    %83 = vmatprep.subr.bf16.mxu0 0
    %84 = vmatpush1.bf16.msra.mxu0 0
    %85 = vmatprep.subr.bf16.mxu0 0
    %86 = vmatpush1.bf16.msra.mxu0 0
    %87 = vmatprep.subr.bf16.mxu0 0
    %88 = vmatpush1.bf16.msra.mxu0 %v65
    %89 = vmatprep.subr.bf16.mxu0 0
    %90 = vmatpush1.bf16.msra.mxu0 %v64
    %91 = vmatprep.subr.bf16.mxu0 0
    %92 = vmatpush2.bf16.msra.mxu0 0
    %93 = vmatprep.subr.bf16.mxu0 0
    %94 = vmatpush2.bf16.msra.mxu0 0
    %95 = vmatprep.subr.bf16.mxu0 0
    %96 = vmatpush2.bf16.msra.mxu0 0
    %97 = vmatprep.subr.bf16.mxu0 0
    %98 = vmatpush2.bf16.msra.mxu0 0
    %99 = vmatprep.subr.bf16.mxu0 0
    %100 = vmatpush2.bf16.msra.mxu0 0
    %101 = vmatprep.subr.bf16.mxu0 0
    %102 = vmatpush2.bf16.msra.mxu0 0
    %103 = vmatprep.subr.bf16.mxu0 0
    %104 = vmatpush2.bf16.msra.mxu0 0
    %105 = vmatprep.subr.bf16.mxu0 0
    %106 = vmatpush2.bf16.msra.mxu0 0
    %107 = vmatprep.mubr.bf16.mxu0 0
    %108 = vmatmul.mubr.bf16.gmra.mxu0 %v70
    %v109 = vpop.f32.mrf.mxu0
    %v110 = vadd.f32 0.0, %v109
    %v111 = vpop.f32.mrf.mxu0
    %v112 = vpop.f32.mrf.mxu0
    %v113 = vadd.f32 0.0, %v112
    %v114 = vpop.f32.mrf.mxu0
    %115 = vmatprep.mubr.bf16.mxu0 0
    %116 = vmatmul.mubr.bf16.gmra.mxu0 %v73
    %v117 = vpop.f32.mrf.mxu0
    %v118 = vadd.f32 0.0, %v117
    %v119 = vpop.f32.mrf.mxu0
    %v120 = vpop.f32.mrf.mxu0
    %v121 = vpop.f32.mrf.mxu0
    %122 = vdwg.mxu0
    %v123 = vpack.c.bf16 %v113, %v110
    %v124 = vpack.c.bf16 %v118, %v118
    %v127 = vunpack.c.l.b16 %v123
    %v128 = vunpack.c.h.b16 %v123
    %v129 = vunpack.c.l.b16 %v124
    %v130 = vpack.c.b16 %v127, %v127
    %v131 = vpack.c.b16 %v128, %v128
    %v132 = vpack.c.b16 %v129, %v129
    %vm136 = vcmask 257024
    %137 = vst.msk [vmem:[#allocation7] sm:$0xf] %vm136, %v130
    %138 = vst.msk [vmem:[#allocation7 + $0x4] sm:$0xf] %vm136, %v131
    %139 = vst.msk [vmem:[#allocation7 + $0x8] sm:$0xf] %vm136, %v132
    // Predicated region
    $region18: #{tpu_custom_call.1} parent=1 // pred_check
      _
    $region19: #{tpu_custom_call.1} parent=1 // pred_check_branch
      %141 = sbr.rel (0) target = $region21
    $region20: #{tpu_custom_call.1} parent=1 // pred_region
      %s143 = ssub.s32 192, 192
      %144 = vsyncadd [#allocation4], %s143
      %s145 = sshll.u32 [#allocation7], 4
      %s146 = int_to_ptr.vmem [resolvable:$true] %s145
      %151 = dma.vmem_to_hbm [thread:$0]  %s146, 192, %s2, [#allocation4], 64, 64, 4
    $region21: #{tpu_custom_call.1} parent=1 // pred_fallthru
      _
    // Predicated region
    $region22: #{tpu_custom_call.1} parent=1 // pred_check
      _
    $region23: #{tpu_custom_call.1} parent=1 // pred_check_branch
      %153 = sbr.rel (0) target = $region25
    $region24: #{tpu_custom_call.1} parent=1 // pred_region
      %154 = dma.done [#allocation4], 192
    $region25: #{tpu_custom_call.1} parent=1 // pred_fallthru
      _
    %155 = vsyncpa [#allocation3], 1
    %156 = vsyncpa [#allocation6], 1
    %157 = vsyncpa [#allocation4], 1

</llo_original>
